<compile_context>
chip_gen: v5e
topology: v5e:2x2
jax: 0.10.0
libtpu: 0.0.40
codegen_flags: <defaults>
</compile_context>

<pallas_src>
import functools
import numpy as np
import jax
import jax.numpy as jnp
from jax.experimental import pallas as pl
from jax.experimental.pallas import tpu as pltpu


# ---------------------------------------------------------------------------
# small helpers
# ---------------------------------------------------------------------------

def _round_up(x, m):
    return ((x + m - 1) // m) * m


def _pick_tile(m, candidates=(512, 256, 128, 64, 32, 16, 8)):
    for c in candidates:
        if m % c == 0:
            return c
    return m


def _pad_gate_cols(w, H, Hp):
    """(in, 3H) with gate order [r,z,n] -> (in, 3Hp), each gate at [g*Hp:g*Hp+H]."""
    w = np.asarray(w, dtype=np.float32)
    out = np.zeros((w.shape[0], 3 * Hp), np.float32)
    for g in range(3):
        out[:, g * Hp:g * Hp + H] = w[:, g * H:(g + 1) * H]
    return out


def _pad_rows(w, Hp):
    """(H, N) -> (Hp, N) zero-padded rows."""
    out = np.zeros((Hp, w.shape[1]), np.float32)
    out[:w.shape[0]] = w
    return out


# ---------------------------------------------------------------------------
# Kernel 1: input projection GEMM (all timesteps, both directions at once)
#   1-D grid over rows; full 6*Hp output width per block -> W/b streamed once.
# ---------------------------------------------------------------------------

def _proj_kernel(x_ref, w_ref, b_ref, o_ref):
    o_ref[...] = (jnp.dot(x_ref[...], w_ref[...],
                          preferred_element_type=jnp.float32) + b_ref[...])


def _proj_dual_kernel(x1_ref, x2_ref, w1_ref, w2_ref, b_ref, o_ref):
    o_ref[...] = (jnp.dot(x1_ref[...], w1_ref[...],
                          preferred_element_type=jnp.float32)
                  + jnp.dot(x2_ref[...], w2_ref[...],
                            preferred_element_type=jnp.float32)
                  + b_ref[...])


def _project(x2d, w, b):
    """x2d: (M, K), w: (K, N), b: (1, N) -> (M, N) f32."""
    M, K = x2d.shape
    K2, N = w.shape
    assert K == K2 and M % 8 == 0 and N % 128 == 0
    tm = _pick_tile(M)
    return pl.pallas_call(
        _proj_kernel,
        out_shape=jax.ShapeDtypeStruct((M, N), jnp.float32),
        grid_spec=pltpu.PrefetchScalarGridSpec(
            num_scalar_prefetch=0,
            grid=(M // tm,),
            in_specs=[
                pl.BlockSpec((tm, K), lambda i: (i, 0)),
                pl.BlockSpec((K, N), lambda i: (0, 0)),   # invariant: DMA'd once
                pl.BlockSpec((1, N), lambda i: (0, 0)),
            ],
            out_specs=pl.BlockSpec((tm, N), lambda i: (i, 0)),
        ),
        compiler_params=pltpu.CompilerParams(dimension_semantics=("parallel",)),
    )(x2d, w, b)


def _project_dual(x1, x2, w1, w2, b):
    """o = x1 @ w1 + x2 @ w2 + b, fused in one kernel (layer >= 1 projection)."""
    M, K1 = x1.shape
    _, K2 = x2.shape
    N = w1.shape[1]
    assert x2.shape[0] == M and w2.shape == (K2, N) and M % 8 == 0
    tm = _pick_tile(M)
    return pl.pallas_call(
        _proj_dual_kernel,
        out_shape=jax.ShapeDtypeStruct((M, N), jnp.float32),
        grid_spec=pltpu.PrefetchScalarGridSpec(
            num_scalar_prefetch=0,
            grid=(M // tm,),
            in_specs=[
                pl.BlockSpec((tm, K1), lambda i: (i, 0)),
                pl.BlockSpec((tm, K2), lambda i: (i, 0)),
                pl.BlockSpec((K1, N), lambda i: (0, 0)),
                pl.BlockSpec((K2, N), lambda i: (0, 0)),
                pl.BlockSpec((1, N), lambda i: (0, 0)),
            ],
            out_specs=pl.BlockSpec((tm, N), lambda i: (i, 0)),
        ),
        compiler_params=pltpu.CompilerParams(dimension_semantics=("parallel",)),
    )(x1, x2, w1, w2, b)


# ---------------------------------------------------------------------------
# Kernel 2: fused bidirectional GRU recurrence (chunked over time)
# ---------------------------------------------------------------------------

def _bigru_kernel(gi_f_ref, gi_b_ref, len_ref, whh_ref, bhh_ref,
                  out_f_ref, out_b_ref,
                  h_ref, mf_ref, mb_ref,
                  *, Hp, Tc, Tp, merged):
    """One grid step = Tc forward steps and the mirrored Tc backward steps.

    gi_f_ref: (Tc, Bp, 3Hp) precomputed x@W_ih+b_ih (forward, natural time order)
    gi_b_ref: (Tc, Bp, 3Hp) same for backward, taken from the reversed time block
    len_ref:  (Bp, 1) int32 sequence lengths
    whh_ref:  merged (2Hp, 6Hp) block-diag W_hh^T   [fwd gates | bwd gates]
              or stacked (2, Hp, 3Hp) per-direction W_hh^T
    bhh_ref:  (1, 6Hp)  [bhh_fwd | bhh_bwd]
    out_*:    (Tc, Bp, Hp) per-direction outputs for this time block
    h_ref:    (Bp, 2Hp) VMEM scratch hidden state  [h_fwd | h_bwd]
    mf/mb:    (Tc, Bp, Hp) VMEM scratch validity masks (precomputed per chunk)
    """
    tchunk = pl.program_id(0)
    Bp = h_ref.shape[0]

    @pl.when(tchunk == 0)
    def _():
        h_ref[...] = jnp.zeros_like(h_ref)

    # Hoisted, grid-invariant loads.
    whh = whh_ref[...]
    bhh = bhh_ref[...]
    if not merged:
        bhh_f = bhh[:, :3 * Hp]
        bhh_b = bhh[:, 3 * Hp:]

    # Precompute validity masks for the whole chunk (hoists broadcasts out of the
    # unrolled recurrence loop).
    lens_v = len_ref[...]                                      # (Bp, 1) int32
    t_fwd = (jax.lax.broadcasted_iota(jnp.int32, (Tc, Bp, Hp), 0)
             + tchunk * Tc)
    lim = lens_v[None]                                         # (1, Bp, 1)
    mf_ref[...] = (t_fwd < lim).astype(jnp.float32)
    mb_ref[...] = ((Tp - 1 - t_fwd) < lim).astype(jnp.float32)

    def gru_update(gi, gh, h):
        r = jax.nn.sigmoid(gi[:, 0:Hp] + gh[:, 0:Hp])
        z = jax.nn.sigmoid(gi[:, Hp:2 * Hp] + gh[:, Hp:2 * Hp])
        n = jnp.tanh(gi[:, 2 * Hp:3 * Hp] + r * gh[:, 2 * Hp:3 * Hp])
        return (1.0 - z) * n + z * h

    def step(j, carry):
        h = h_ref[...]                                         # (Bp, 2Hp)
        h_f = h[:, :Hp]
        h_b = h[:, Hp:]

        gi_f = gi_f_ref[j]                                     # (Bp, 3Hp)
        gi_b = gi_b_ref[Tc - 1 - j]                            # reversed in block

        if merged:
            # one MXU push, K = 2Hp, block-diagonal weight
            gh = jnp.dot(h, whh, preferred_element_type=jnp.float32) + bhh
            gh_f = gh[:, :3 * Hp]
            gh_b = gh[:, 3 * Hp:]
        else:
            gh_f = (jnp.dot(h_f, whh[0], preferred_element_type=jnp.float32)
                    + bhh_f)
            gh_b = (jnp.dot(h_b, whh[1], preferred_element_type=jnp.float32)
                    + bhh_b)

        hf_new = gru_update(gi_f, gh_f, h_f)
        hb_new = gru_update(gi_b, gh_b, h_b)

        # packed-sequence masking (precomputed f32 masks, arithmetic select)
        m_f = mf_ref[j]                                        # (Bp, Hp)
        m_b = mb_ref[j]
        hf_upd = h_f + m_f * (hf_new - h_f)
        hb_upd = h_b + m_b * (hb_new - h_b)

        h_ref[:, :Hp] = hf_upd
        h_ref[:, Hp:] = hb_upd
        out_f_ref[j] = m_f * hf_upd
        out_b_ref[Tc - 1 - j] = m_b * hb_upd
        return carry

    jax.lax.fori_loop(0, Tc, step, 0, unroll=True)


def _bigru(gi6, lens, whh, bhh, *, Hp, Tc):
    """gi6: (Tp, Bp, 6Hp) precomputed input gates (fwd 3Hp | bwd 3Hp)."""
    Tp, Bp, six_hp = gi6.shape
    assert six_hp == 6 * Hp and Tp % Tc == 0
    n_chunks = Tp // Tc
    merged = (whh.ndim == 2)
    whh_spec = (pl.BlockSpec((2 * Hp, 6 * Hp), lambda t: (0, 0)) if merged
                else pl.BlockSpec((2, Hp, 3 * Hp), lambda t: (0, 0, 0)))
    kernel = functools.partial(_bigru_kernel, Hp=Hp, Tc=Tc, Tp=Tp, merged=merged)
    return pl.pallas_call(
        kernel,
        out_shape=(jax.ShapeDtypeStruct((Tp, Bp, Hp), jnp.float32),
                   jax.ShapeDtypeStruct((Tp, Bp, Hp), jnp.float32)),
        grid_spec=pltpu.PrefetchScalarGridSpec(
            num_scalar_prefetch=0,
            grid=(n_chunks,),
            in_specs=[
                # forward half of gi6, natural time order
                pl.BlockSpec((Tc, Bp, 3 * Hp), lambda t: (t, 0, 0)),
                # backward half of gi6, reversed time blocks
                pl.BlockSpec((Tc, Bp, 3 * Hp),
                             lambda t: (n_chunks - 1 - t, 0, 1)),
                pl.BlockSpec((Bp, 1), lambda t: (0, 0)),
                whh_spec,
                pl.BlockSpec((1, 6 * Hp), lambda t: (0, 0)),
            ],
            out_specs=(
                pl.BlockSpec((Tc, Bp, Hp), lambda t: (t, 0, 0)),
                pl.BlockSpec((Tc, Bp, Hp), lambda t: (n_chunks - 1 - t, 0, 0)),
            ),
            scratch_shapes=[pltpu.VMEM((Bp, 2 * Hp), jnp.float32),
                            pltpu.VMEM((Tc, Bp, Hp), jnp.float32),
                            pltpu.VMEM((Tc, Bp, Hp), jnp.float32)],
        ),
        compiler_params=pltpu.CompilerParams(
            dimension_semantics=("arbitrary",)),   # sequential recurrence
    )(gi6, gi6, lens, whh, bhh)


# ---------------------------------------------------------------------------
# Kernel 3: (fwd+bwd)/2 + l2norm epilogue on large flattened tiles
# ---------------------------------------------------------------------------

def _combine_kernel(f_ref, b_ref, o_ref, *, no_txtnorm, eps):
    avg = (f_ref[...] + b_ref[...]) * 0.5
    if not no_txtnorm:
        # padded lanes of fwd/bwd are exactly zero, so summing over Hp == over H
        norm = jnp.sqrt(jnp.sum(avg * avg, axis=-1, keepdims=True)) + eps
        avg = avg / norm        # exact divide (avoid approx-reciprocal drift)
    o_ref[...] = avg


def _combine(fwd, bwd, *, no_txtnorm, eps=1e-8):
    Tp, Bp, Hp = fwd.shape
    M = Tp * Bp
    f2 = fwd.reshape(M, Hp)
    b2 = bwd.reshape(M, Hp)
    tr = _pick_tile(M, (1024, 512, 256, 128, 64, 32, 16, 8))
    kernel = functools.partial(_combine_kernel, no_txtnorm=no_txtnorm, eps=eps)
    out = pl.pallas_call(
        kernel,
        out_shape=jax.ShapeDtypeStruct((M, Hp), jnp.float32),
        grid_spec=pltpu.PrefetchScalarGridSpec(
            num_scalar_prefetch=0,
            grid=(M // tr,),
            in_specs=[pl.BlockSpec((tr, Hp), lambda i: (i, 0)),
                      pl.BlockSpec((tr, Hp), lambda i: (i, 0))],
            out_specs=pl.BlockSpec((tr, Hp), lambda i: (i, 0)),
        ),
        compiler_params=pltpu.CompilerParams(dimension_semantics=("parallel",)),
    )(f2, b2)
    return out.reshape(Tp, Bp, Hp)


# ---------------------------------------------------------------------------
# Module wrapper (parameter setup + glue)
# ---------------------------------------------------------------------------

class EncoderTextBigruPallas:
    def __init__(self, vocab_size, embed_size, word_dim, num_layers,
                 use_bi_gru=True, no_txtnorm=False, key=None, time_chunk=32):
        assert use_bi_gru, "this implementation follows the bidirectional path"
        self.embed_size = embed_size
        self.word_dim = word_dim
        self.num_layers = num_layers
        self.no_txtnorm = no_txtnorm
        self.hidden = embed_size
        self.hidden_p = _round_up(embed_size, 128)   # lane-aligned gates
        self.time_chunk = time_chunk
        # Merge the per-direction hidden matmuls into one block-diagonal dot when
        # it fills (rather than exceeds) the 256-wide MXU K dimension.
        self.merge_hh = (self.hidden_p <= 256)

        if key is None:
            key = jax.random.PRNGKey(0)
        keys = jax.random.split(key, 2 + 8 * num_layers)

        # nn.Embedding + xavier_uniform_ (the wemb_type=None branch of init_weights)
        bound = float(np.sqrt(6.0 / (vocab_size + word_dim)))
        self.embed = jax.random.uniform(keys[0], (vocab_size, word_dim),
                                        jnp.float32, -bound, bound)

        # GRU parameters, PyTorch default init: U(-1/sqrt(H), 1/sqrt(H)),
        # gate order [r, z, n].  Stored transposed: W^T of shape (in, 3H).
        H, Hp = self.hidden, self.hidden_p
        k = 1.0 / np.sqrt(H)
        self.gru_params = []          # unpadded (for the reference check)
        ki = 2
        for layer in range(num_layers):
            in_dim = word_dim if layer == 0 else 2 * H
            layer_p = {}
            for direction in ("fwd", "bwd"):
                w_ih = jax.random.uniform(keys[ki], (in_dim, 3 * H),
                                          jnp.float32, -k, k); ki += 1
                w_hh = jax.random.uniform(keys[ki], (H, 3 * H),
                                          jnp.float32, -k, k); ki += 1
                b_ih = jax.random.uniform(keys[ki], (1, 3 * H),
                                          jnp.float32, -k, k); ki += 1
                b_hh = jax.random.uniform(keys[ki], (1, 3 * H),
                                          jnp.float32, -k, k); ki += 1
                layer_p[direction] = (w_ih, w_hh, b_ih, b_hh)
            self.gru_params.append(layer_p)

        # Padded / packed parameters used by the Pallas kernels.
        self.packed = []
        for layer in range(num_layers):
            pf = self.gru_params[layer]["fwd"]
            pb = self.gru_params[layer]["bwd"]
            wf_hh = _pad_gate_cols(pf[1], H, Hp)          # (H, 3Hp)
            wb_hh = _pad_gate_cols(pb[1], H, Hp)
            if self.merge_hh:
                whh = np.zeros((2 * Hp, 6 * Hp), np.float32)
                whh[:H, :3 * Hp] = wf_hh
                whh[Hp:Hp + H, 3 * Hp:] = wb_hh           # block diagonal
            else:
                whh = np.stack([_pad_rows(wf_hh, Hp), _pad_rows(wb_hh, Hp)], 0)
            entry = {
                "whh": jnp.asarray(whh),
                "bhh": jnp.asarray(np.concatenate(
                    [_pad_gate_cols(pf[3], H, Hp),
                     _pad_gate_cols(pb[3], H, Hp)], axis=1)),      # (1, 6Hp)
                "bih6": jnp.asarray(np.concatenate(
                    [_pad_gate_cols(pf[2], H, Hp),
                     _pad_gate_cols(pb[2], H, Hp)], axis=1)),      # (1, 6Hp)
            }
            if layer == 0:
                entry["wih6"] = jnp.asarray(np.concatenate(
                    [_pad_gate_cols(pf[0], H, Hp),
                     _pad_gate_cols(pb[0], H, Hp)], axis=1))       # (D, 6Hp)
            else:
                wf = np.asarray(pf[0]); wb = np.asarray(pb[0])     # (2H, 3H)
                top = np.concatenate(
                    [_pad_rows(_pad_gate_cols(wf[:H], H, Hp), Hp),
                     _pad_rows(_pad_gate_cols(wb[:H], H, Hp), Hp)], axis=1)
                bot = np.concatenate(
                    [_pad_rows(_pad_gate_cols(wf[H:], H, Hp), Hp),
                     _pad_rows(_pad_gate_cols(wb[H:], H, Hp), Hp)], axis=1)
                entry["wih6_top"] = jnp.asarray(top)               # (Hp, 6Hp)
                entry["wih6_bot"] = jnp.asarray(bot)
            self.packed.append(entry)

        # self.fc exists in the PyTorch module but is unused by forward(); omitted.

    def __call__(self, x, lengths):
        """x: (B, T) int32 token ids (batch-first). lengths: length-B ints."""
        lengths_np = np.asarray(lengths, dtype=np.int32)
        B, T = x.shape
        t_max = int(lengths_np.max())
        H, Hp = self.hidden, self.hidden_p
        Tc = min(self.time_chunk, _round_up(T, 8))
        Tp = _round_up(T, Tc)
        Bp = _round_up(max(B, 8), 8)

        # Embedding gather done directly in time-major order (transpose the tiny
        # int id matrix instead of the float embeddings).
        # TODO(synk): the gather itself stays an XLA op (no clean tiled Pallas gather).
        x_tb = jnp.pad(jnp.transpose(x, (1, 0)), ((0, Tp - T), (0, Bp - B)))
        x_emb = jnp.take(self.embed, x_tb, axis=0)            # (Tp, Bp, D)

        lens_pad = np.zeros((Bp, 1), np.int32)
        lens_pad[:B, 0] = lengths_np
        lens_dev = jnp.asarray(lens_pad)

        D = x_emb.shape[-1]
        fwd = bwd = None
        for layer, P in enumerate(self.packed):
            if layer == 0:
                gi6 = _project(x_emb.reshape(Tp * Bp, D), P["wih6"], P["bih6"])
            else:
                # concat([fwd, bwd]) @ W_ih fused into one kernel: fwd@W_top + bwd@W_bot + b
                gi6 = _project_dual(fwd.reshape(Tp * Bp, Hp),
                                    bwd.reshape(Tp * Bp, Hp),
                                    P["wih6_top"], P["wih6_bot"], P["bih6"])
            gi6 = gi6.reshape(Tp, Bp, 6 * Hp)
            fwd, bwd = _bigru(gi6, lens_dev, P["whh"], P["bhh"], Hp=Hp, Tc=Tc)

        cap = _combine(fwd, bwd, no_txtnorm=self.no_txtnorm)   # (Tp, Bp, Hp)
        # pad_packed_sequence truncates to max(lengths); slice the valid region
        # first so the batch-first transpose only touches the small final output.
        return jnp.transpose(cap[:t_max, :B, :H], (1, 0, 2))


# ---------------------------------------------------------------------------
# Pure-JAX reference (same math, lax.scan) for a correctness check
# ---------------------------------------------------------------------------

def _ref_gru_dir(x_tbd, mask_tb1, w_ih, w_hh, b_ih, b_hh, hidden, reverse):
    T, B, _ = x_tbd.shape
    idx = jnp.arange(T)[::-1] if reverse else jnp.arange(T)

    def step(h, t):
        x = x_tbd[t]
        m = mask_tb1[t]
        gi = jnp.dot(x, w_ih, precision=jax.lax.Precision.HIGHEST) + b_ih
        gh = jnp.dot(h, w_hh, precision=jax.lax.Precision.HIGHEST) + b_hh
        H = hidden
        r = jax.nn.sigmoid(gi[:, :H] + gh[:, :H])
        z = jax.nn.sigmoid(gi[:, H:2 * H] + gh[:, H:2 * H])
        n = jnp.tanh(gi[:, 2 * H:] + r * gh[:, 2 * H:])
        h_new = (1.0 - z) * n + z * h
        h_upd = m * h_new + (1.0 - m) * h
        return h_upd, m * h_upd

    _, outs = jax.lax.scan(step, jnp.zeros((B, hidden), jnp.float32), idx)
    if reverse:
        outs = outs[::-1]
    return outs


def _reference_forward(enc, x, lengths):
    lengths = np.asarray(lengths, dtype=np.int32)
    B, T = x.shape
    t_max = int(lengths.max())
    x_emb = jnp.take(enc.embed, x, axis=0)
    inp = jnp.transpose(x_emb, (1, 0, 2))
    mask = (jnp.arange(T)[:, None]
            < jnp.asarray(lengths)[None, :]).astype(jnp.float32)[:, :, None]
    fwd = bwd = None
    for layer in range(enc.num_layers):
        pf = enc.gru_params[layer]["fwd"]
        pb = enc.gru_params[layer]["bwd"]
        fwd = _ref_gru_dir(inp, mask, *pf, hidden=enc.hidden, reverse=False)
        bwd = _ref_gru_dir(inp, mask, *pb, hidden=enc.hidden, reverse=True)
        inp = jnp.concatenate([fwd, bwd], axis=-1)
    avg = (fwd + bwd) * 0.5
    if not enc.no_txtnorm:
        avg = avg / (jnp.sqrt(jnp.sum(avg * avg, axis=-1, keepdims=True)) + 1e-8)
    return jnp.transpose(avg, (1, 0, 2))[:, :t_max, :]


# ---------------------------------------------------------------------------
# Main
# ---------------------------------------------------------------------------

if __name__ == "__main__":
    VOCAB, EMBED, WORD_DIM, LAYERS = 50, 32, 32, 1
    B, T = 2, 8

    key = jax.random.PRNGKey(0)
    k_tok, k_params = jax.random.split(key)

    enc = EncoderTextBigruPallas(VOCAB, EMBED, WORD_DIM, LAYERS,
                                 use_bi_gru=True, no_txtnorm=False, key=k_params)

    x = jax.random.randint(k_tok, (B, T), 0, VOCAB, dtype=jnp.int32)
    lengths = np.array([8, 5], dtype=np.int32)   # sorted descending (pack semantics)

    cap_emb = enc(x, lengths)
    cap_emb = jax.block_until_ready(cap_emb)

    ref = jax.block_until_ready(_reference_forward(enc, x, lengths))
    np.testing.assert_allclose(np.asarray(cap_emb), np.asarray(ref),
                               rtol=2e-3, atol=2e-3)
    assert cap_emb.shape == (B, int(lengths.max()), EMBED)

    print("KERNEL_OK")
</pallas_src>

<mosaic_0001>
module attributes {stable_mosaic.version = 11 : i64} {
  func.func @_proj_kernel(%arg0: i32, %arg1: memref<64x32xf32, #tpu.memory_space<vmem>>, %arg2: memref<32x768xf32, #tpu.memory_space<vmem>>, %arg3: memref<1x768xf32, #tpu.memory_space<vmem>>, %arg4: memref<64x768xf32, #tpu.memory_space<vmem>>) attributes {dimension_semantics = [#tpu.dimension_semantics<parallel>], iteration_bounds = array<i64: 1>, scalar_prefetch = 0 : i64, scratch_operands = 0 : i64, tpu.core_type = #tpu.core_type<tc>, window_params = [{transform_indices = @transform_0, window_bounds = array<i64: 64, 32>}, {pipeline_mode = #tpu.pipeline_mode<synchronous>, transform_indices = @transform_1, window_bounds = array<i64: 32, 768>}, {pipeline_mode = #tpu.pipeline_mode<synchronous>, transform_indices = @transform_2, window_bounds = array<i64: 1, 768>}, {transform_indices = @transform_3, window_bounds = array<i64: 64, 768>}]} {
    %c0 = arith.constant 0 : index
    %c0_0 = arith.constant 0 : index
    %0 = vector.load %arg1[%c0, %c0_0] : memref<64x32xf32, #tpu.memory_space<vmem>>, vector<64x32xf32>
    %c0_1 = arith.constant 0 : index
    %c0_2 = arith.constant 0 : index
    %1 = vector.load %arg2[%c0_1, %c0_2] : memref<32x768xf32, #tpu.memory_space<vmem>>, vector<32x768xf32>
    %cst = arith.constant dense<0.000000e+00> : vector<64x768xf32>
    %2 = tpu.matmul %0, %1, %cst {dimension_numbers = #tpu.dot_dimension_numbers<[1], [0], [0], [1], [0, 0, 1, 1], [], []>} : vector<64x32xf32>, vector<32x768xf32>, vector<64x768xf32> -> vector<64x768xf32>
    %c0_3 = arith.constant 0 : index
    %c0_4 = arith.constant 0 : index
    %3 = vector.load %arg3[%c0_3, %c0_4] : memref<1x768xf32, #tpu.memory_space<vmem>>, vector<1x768xf32>
    %4 = vector.broadcast %3 : vector<1x768xf32> to vector<64x768xf32>
    %5 = arith.addf %2, %4 : vector<64x768xf32>
    %c0_5 = arith.constant 0 : index
    %c0_6 = arith.constant 0 : index
    %6 = vector.load %arg4[%c0_5, %c0_6] : memref<64x768xf32, #tpu.memory_space<vmem>>, vector<64x768xf32>
    tpu.vector_store %arg4[%c0_5, %c0_6], %5 {strides = array<i32>} : memref<64x768xf32, #tpu.memory_space<vmem>>, vector<64x768xf32>,
    return
  }
  func.func @transform_0(%arg0: i32) -> (i32, i32) {
    %c0_i32 = arith.constant 0 : i32
    %c0_i32_0 = arith.constant 0 : i32
    return %arg0, %c0_i32 : i32, i32
  }
  func.func @transform_1(%arg0: i32) -> (i32, i32) {
    %c0_i32 = arith.constant 0 : i32
    %c0_i32_0 = arith.constant 0 : i32
    %c0_i32_1 = arith.constant 0 : i32
    return %c0_i32, %c0_i32_0 : i32, i32
  }
  func.func @transform_2(%arg0: i32) -> (i32, i32) {
    %c0_i32 = arith.constant 0 : i32
    %c0_i32_0 = arith.constant 0 : i32
    %c0_i32_1 = arith.constant 0 : i32
    return %c0_i32, %c0_i32_0 : i32, i32
  }
  func.func @transform_3(%arg0: i32) -> (i32, i32) {
    %c0_i32 = arith.constant 0 : i32
    %c0_i32_0 = arith.constant 0 : i32
    return %arg0, %c0_i32 : i32, i32
  }
}

</mosaic_0001>

<llo_original>
// kernel: tpu_custom_call.1
$region0: #{tpu_custom_call.1}
  #allocation0 [shape = 'u32[]', space=smem, size = 0x4, offset = 0x4, fixed_abs, tag = 'smem constant byte address 0x4 - core index']
  #allocation1 [shape = 'u32[72,128]{1,0:T(1,128)}', space=vmem, size = 0x9000, scoped, tag = 'internal scratch']
  %s0 = inlined_call_operand.vmem [shape: f32[64,32], index: 0, kind: input, shape index: {}]
  %s1 = inlined_call_operand.hbm [shape: f32[32,768], index: 1, kind: input, shape index: {}]
  %s2 = inlined_call_operand.vmem [shape: f32[1,768], index: 2, kind: input, shape index: {}]
  %s3 = inlined_call_operand.hbm [shape: f32[64,768], index: 3, kind: output, shape index: {}]
  %s4 = sld [smem:[#allocation0]]
  $region26: #{tpu_custom_call.1} parent=0
    _
  %s6 = ssub.s32 1, %s4
  %s7 = scalar_select 0, %s6, %s4
  $region1: #{tpu_custom_call.1} parent=0
    #allocation2 [shape = 'u8[98304]{0}', space=vmem, size = 0x18000, scoped, tag = 'input window, operand 1, single buffered']
    #allocation3 [shape = 's32[1]{0}', space=sflag, size = 0x4, scoped, tag = 'scoped memory for tpu_custom_call.1']
    #allocation4 [shape = 's32[1]{0}', space=sflag, size = 0x4, scoped, tag = 'scoped memory for tpu_custom_call.1']
    #allocation5 [shape = 'u8[196608]{0}', space=vmem, size = 0x30000, scoped, tag = 'output window, operand 0, single buffered']
    %8 = vsyncpa [#allocation3], 0
    %9 = vsyncpa [#allocation4], 0
    // Predicated region
    $region2: #{tpu_custom_call.1} parent=1 // pred_check
      _
    $region3: #{tpu_custom_call.1} parent=1 // pred_check_branch
      %11 = sbr.rel (0) target = $region5
    $region4: #{tpu_custom_call.1} parent=1 // pred_region
      _
    $region5: #{tpu_custom_call.1} parent=1 // pred_fallthru
      _
    // Predicated region
    $region6: #{tpu_custom_call.1} parent=1 // pred_check
      _
    $region7: #{tpu_custom_call.1} parent=1 // pred_check_branch
      %13 = sbr.rel (0) target = $region9
    $region8: #{tpu_custom_call.1} parent=1 // pred_region
      %15 = vsyncadd [#allocation3], 0
      %s16 = sshll.u32 %s1, 4
      %s17 = int_to_ptr.hbm [resolvable:$true] %s16
      %s18 = sshll.u32 [#allocation2], 4
      %s19 = int_to_ptr.vmem [resolvable:$true] %s18
      %24 = dma.hbm_to_vmem [thread:$0]  %s17, 3072, %s19, [#allocation3], 768, 768, 48
    $region9: #{tpu_custom_call.1} parent=1 // pred_fallthru
      _
    // Predicated region
    $region10: #{tpu_custom_call.1} parent=1 // pred_check
      _
    $region11: #{tpu_custom_call.1} parent=1 // pred_check_branch
      %26 = sbr.rel (0) target = $region13
    $region12: #{tpu_custom_call.1} parent=1 // pred_region
      _
    $region13: #{tpu_custom_call.1} parent=1 // pred_fallthru
      _
    // Predicated region
    $region14: #{tpu_custom_call.1} parent=1 // pred_check
      _
    $region15: #{tpu_custom_call.1} parent=1 // pred_check_branch
      %28 = sbr.rel (0) target = $region17
    $region16: #{tpu_custom_call.1} parent=1 // pred_region
      %30 = dma.done [#allocation3], 3072
    $region17: #{tpu_custom_call.1} parent=1 // pred_fallthru
      _
    %v31 = vld [vmem:[%s0] sm:$0xff]
    %v32 = vld [vmem:[%s0 + $0x8] sm:$0xff]
    %v33 = vld [vmem:[%s0 + $0x10] sm:$0xff]
    %v34 = vld [vmem:[%s0 + $0x18] sm:$0xff]
    %v35 = vld [vmem:[%s0 + $0x20] sm:$0xff]
    %v36 = vld [vmem:[%s0 + $0x28] sm:$0xff]
    %v37 = vld [vmem:[%s0 + $0x30] sm:$0xff]
    %v38 = vld [vmem:[%s0 + $0x38] sm:$0xff]
    %v39 = vld [vmem:[#allocation2] sm:$0xff]
    %v40 = vld [vmem:[#allocation2 + $0x8] sm:$0xff]
    %v41 = vld [vmem:[#allocation2 + $0x10] sm:$0xff]
    %v42 = vld [vmem:[#allocation2 + $0x18] sm:$0xff]
    %v43 = vld [vmem:[#allocation2 + $0x20] sm:$0xff]
    %v44 = vld [vmem:[#allocation2 + $0x28] sm:$0xff]
    %v45 = vld [vmem:[#allocation2 + $0x30] sm:$0xff]
    %v46 = vld [vmem:[#allocation2 + $0x38] sm:$0xff]
    %v47 = vld [vmem:[#allocation2 + $0x40] sm:$0xff]
    %v48 = vld [vmem:[#allocation2 + $0x48] sm:$0xff]
    %v49 = vld [vmem:[#allocation2 + $0x50] sm:$0xff]
    %v50 = vld [vmem:[#allocation2 + $0x58] sm:$0xff]
    %v51 = vld [vmem:[#allocation2 + $0x60] sm:$0xff]
    %v52 = vld [vmem:[#allocation2 + $0x68] sm:$0xff]
    %v53 = vld [vmem:[#allocation2 + $0x70] sm:$0xff]
    %v54 = vld [vmem:[#allocation2 + $0x78] sm:$0xff]
    %v55 = vld [vmem:[#allocation2 + $0x80] sm:$0xff]
    %v56 = vld [vmem:[#allocation2 + $0x88] sm:$0xff]
    %v57 = vld [vmem:[#allocation2 + $0x90] sm:$0xff]
    %v58 = vld [vmem:[#allocation2 + $0x98] sm:$0xff]
    %v59 = vld [vmem:[#allocation2 + $0xa0] sm:$0xff]
    %v60 = vld [vmem:[#allocation2 + $0xa8] sm:$0xff]
    %v61 = vld [vmem:[#allocation2 + $0xb0] sm:$0xff]
    %v62 = vld [vmem:[#allocation2 + $0xb8] sm:$0xff]
    %v63 = vld [vmem:[%s2] sm:$0x3f]
    %v65 = vperm.slane %v63, 0
    %v66 = vperm.slane %v63, 1
    %v67 = vperm.slane %v63, 2
    %v68 = vperm.slane %v63, 3
    %v69 = vperm.slane %v63, 4
    %v70 = vperm.slane %v63, 5
    %vm77 = vcmask 261120
    %v79 = vsel %vm77, %v31, 0
    %v82 = vsel %vm77, %v32, 0
    %v85 = vsel %vm77, %v33, 0
    %v88 = vsel %vm77, %v34, 0
    %v91 = vsel %vm77, %v35, 0
    %v94 = vsel %vm77, %v36, 0
    %v97 = vsel %vm77, %v37, 0
    %v100 = vsel %vm77, %v38, 0
    %102 = vmatpush.msra.mxu0 0.0
    %103 = vmatpush.msra.mxu0 0.0
    %104 = vmatpush.msra.mxu0 0.0
    %105 = vmatpush.msra.mxu0 0.0
    %106 = vmatpush.msra.mxu0 0.0
    %107 = vmatpush.msra.mxu0 0.0
    %108 = vmatpush.msra.mxu0 0.0
    %109 = vmatpush.msra.mxu0 0.0
    %110 = vmatpush.msra.mxu0 0.0
    %111 = vmatpush.msra.mxu0 0.0
    %112 = vmatpush.msra.mxu0 0.0
    %113 = vmatpush.msra.mxu0 0.0
    %114 = vmatpush.msra.mxu0 %v57
    %115 = vmatpush.msra.mxu0 %v51
    %116 = vmatpush.msra.mxu0 %v45
    %117 = vmatpush.msra.mxu0 %v39
    %118 = vmatmul.f32.gmra.mxu0 %v79
    %v119 = vpop.f32.mrf.mxu0
    %v120 = vadd.f32 %v65, %v119
    %121 = vmatmul.f32.gmra.mxu0 %v82
    %v122 = vpop.f32.mrf.mxu0
    %v123 = vadd.f32 %v65, %v122
    %124 = vmatmul.f32.gmra.mxu0 %v85
    %v125 = vpop.f32.mrf.mxu0
    %v126 = vadd.f32 %v65, %v125
    %127 = vmatmul.f32.gmra.mxu0 %v88
    %v128 = vpop.f32.mrf.mxu0
    %v129 = vadd.f32 %v65, %v128
    %130 = vmatmul.f32.gmra.mxu0 %v91
    %v131 = vpop.f32.mrf.mxu0
    %v132 = vadd.f32 %v65, %v131
    %133 = vmatmul.f32.gmra.mxu0 %v94
    %v134 = vpop.f32.mrf.mxu0
    %v135 = vadd.f32 %v65, %v134
    %136 = vmatmul.f32.gmra.mxu0 %v97
    %v137 = vpop.f32.mrf.mxu0
    %v138 = vadd.f32 %v65, %v137
    %139 = vmatmul.f32.gmra.mxu0 %v100
    %v140 = vpop.f32.mrf.mxu0
    %v141 = vadd.f32 %v65, %v140
    %142 = vdwg.mxu0
    %143 = vmatpush.msra.mxu0 0.0
    %144 = vmatpush.msra.mxu0 0.0
    %145 = vmatpush.msra.mxu0 0.0
    %146 = vmatpush.msra.mxu0 0.0
    %147 = vmatpush.msra.mxu0 0.0
    %148 = vmatpush.msra.mxu0 0.0
    %149 = vmatpush.msra.mxu0 0.0
    %150 = vmatpush.msra.mxu0 0.0
    %151 = vmatpush.msra.mxu0 0.0
    %152 = vmatpush.msra.mxu0 0.0
    %153 = vmatpush.msra.mxu0 0.0
    %154 = vmatpush.msra.mxu0 0.0
    %155 = vmatpush.msra.mxu0 %v58
    %156 = vmatpush.msra.mxu0 %v52
    %157 = vmatpush.msra.mxu0 %v46
    %158 = vmatpush.msra.mxu0 %v40
    %159 = vmatmul.f32.gmra.mxu0 %v79
    %v160 = vpop.f32.mrf.mxu0
    %v161 = vadd.f32 %v66, %v160
    %162 = vmatmul.f32.gmra.mxu0 %v82
    %v163 = vpop.f32.mrf.mxu0
    %v164 = vadd.f32 %v66, %v163
    %165 = vmatmul.f32.gmra.mxu0 %v85
    %v166 = vpop.f32.mrf.mxu0
    %v167 = vadd.f32 %v66, %v166
    %168 = vmatmul.f32.gmra.mxu0 %v88
    %v169 = vpop.f32.mrf.mxu0
    %v170 = vadd.f32 %v66, %v169
    %171 = vmatmul.f32.gmra.mxu0 %v91
    %v172 = vpop.f32.mrf.mxu0
    %v173 = vadd.f32 %v66, %v172
    %174 = vmatmul.f32.gmra.mxu0 %v94
    %v175 = vpop.f32.mrf.mxu0
    %v176 = vadd.f32 %v66, %v175
    %177 = vmatmul.f32.gmra.mxu0 %v97
    %v178 = vpop.f32.mrf.mxu0
    %v179 = vadd.f32 %v66, %v178
    %180 = vmatmul.f32.gmra.mxu0 %v100
    %v181 = vpop.f32.mrf.mxu0
    %v182 = vadd.f32 %v66, %v181
    %183 = vdwg.mxu0
    %184 = vmatpush.msra.mxu0 0.0
    %185 = vmatpush.msra.mxu0 0.0
    %186 = vmatpush.msra.mxu0 0.0
    %187 = vmatpush.msra.mxu0 0.0
    %188 = vmatpush.msra.mxu0 0.0
    %189 = vmatpush.msra.mxu0 0.0
    %190 = vmatpush.msra.mxu0 0.0
    %191 = vmatpush.msra.mxu0 0.0
    %192 = vmatpush.msra.mxu0 0.0
    %193 = vmatpush.msra.mxu0 0.0
    %194 = vmatpush.msra.mxu0 0.0
    %195 = vmatpush.msra.mxu0 0.0
    %196 = vmatpush.msra.mxu0 %v59
    %197 = vmatpush.msra.mxu0 %v53
    %198 = vmatpush.msra.mxu0 %v47
    %199 = vmatpush.msra.mxu0 %v41
    %200 = vmatmul.f32.gmra.mxu0 %v79
    %v201 = vpop.f32.mrf.mxu0
    %v202 = vadd.f32 %v67, %v201
    %203 = vmatmul.f32.gmra.mxu0 %v82
    %v204 = vpop.f32.mrf.mxu0
    %v205 = vadd.f32 %v67, %v204
    %206 = vmatmul.f32.gmra.mxu0 %v85
    %v207 = vpop.f32.mrf.mxu0
    %v208 = vadd.f32 %v67, %v207
    %209 = vmatmul.f32.gmra.mxu0 %v88
    %v210 = vpop.f32.mrf.mxu0
    %v211 = vadd.f32 %v67, %v210
    %212 = vmatmul.f32.gmra.mxu0 %v91
    %v213 = vpop.f32.mrf.mxu0
    %v214 = vadd.f32 %v67, %v213
    %215 = vmatmul.f32.gmra.mxu0 %v94
    %v216 = vpop.f32.mrf.mxu0
    %v217 = vadd.f32 %v67, %v216
    %218 = vmatmul.f32.gmra.mxu0 %v97
    %v219 = vpop.f32.mrf.mxu0
    %v220 = vadd.f32 %v67, %v219
    %221 = vmatmul.f32.gmra.mxu0 %v100
    %v222 = vpop.f32.mrf.mxu0
    %v223 = vadd.f32 %v67, %v222
    %224 = vdwg.mxu0
    %225 = vmatpush.msra.mxu0 0.0
    %226 = vmatpush.msra.mxu0 0.0
    %227 = vmatpush.msra.mxu0 0.0
    %228 = vmatpush.msra.mxu0 0.0
    %229 = vmatpush.msra.mxu0 0.0
    %230 = vmatpush.msra.mxu0 0.0
    %231 = vmatpush.msra.mxu0 0.0
    %232 = vmatpush.msra.mxu0 0.0
    %233 = vmatpush.msra.mxu0 0.0
    %234 = vmatpush.msra.mxu0 0.0
    %235 = vmatpush.msra.mxu0 0.0
    %236 = vmatpush.msra.mxu0 0.0
    %237 = vmatpush.msra.mxu0 %v60
    %238 = vmatpush.msra.mxu0 %v54
    %239 = vmatpush.msra.mxu0 %v48
    %240 = vmatpush.msra.mxu0 %v42
    %241 = vmatmul.f32.gmra.mxu0 %v79
    %v242 = vpop.f32.mrf.mxu0
    %v243 = vadd.f32 %v68, %v242
    %244 = vmatmul.f32.gmra.mxu0 %v82
    %v245 = vpop.f32.mrf.mxu0
    %v246 = vadd.f32 %v68, %v245
    %247 = vmatmul.f32.gmra.mxu0 %v85
    %v248 = vpop.f32.mrf.mxu0
    %v249 = vadd.f32 %v68, %v248
    %250 = vmatmul.f32.gmra.mxu0 %v88
    %v251 = vpop.f32.mrf.mxu0
    %v252 = vadd.f32 %v68, %v251
    %253 = vmatmul.f32.gmra.mxu0 %v91
    %v254 = vpop.f32.mrf.mxu0
    %v255 = vadd.f32 %v68, %v254
    %256 = vmatmul.f32.gmra.mxu0 %v94
    %v257 = vpop.f32.mrf.mxu0
    %v258 = vadd.f32 %v68, %v257
    %259 = vmatmul.f32.gmra.mxu0 %v97
    %v260 = vpop.f32.mrf.mxu0
    %v261 = vadd.f32 %v68, %v260
    %262 = vmatmul.f32.gmra.mxu0 %v100
    %v263 = vpop.f32.mrf.mxu0
    %v264 = vadd.f32 %v68, %v263
    %265 = vdwg.mxu0
    %266 = vmatpush.msra.mxu0 0.0
    %267 = vmatpush.msra.mxu0 0.0
    %268 = vmatpush.msra.mxu0 0.0
    %269 = vmatpush.msra.mxu0 0.0
    %270 = vmatpush.msra.mxu0 0.0
    %271 = vmatpush.msra.mxu0 0.0
    %272 = vmatpush.msra.mxu0 0.0
    %273 = vmatpush.msra.mxu0 0.0
    %274 = vmatpush.msra.mxu0 0.0
    %275 = vmatpush.msra.mxu0 0.0
    %276 = vmatpush.msra.mxu0 0.0
    %277 = vmatpush.msra.mxu0 0.0
    %278 = vmatpush.msra.mxu0 %v61
    %279 = vmatpush.msra.mxu0 %v55
    %280 = vmatpush.msra.mxu0 %v49
    %281 = vmatpush.msra.mxu0 %v43
    %282 = vmatmul.f32.gmra.mxu0 %v79
    %v283 = vpop.f32.mrf.mxu0
    %v284 = vadd.f32 %v69, %v283
    %285 = vmatmul.f32.gmra.mxu0 %v82
    %v286 = vpop.f32.mrf.mxu0
    %v287 = vadd.f32 %v69, %v286
    %288 = vmatmul.f32.gmra.mxu0 %v85
    %v289 = vpop.f32.mrf.mxu0
    %v290 = vadd.f32 %v69, %v289
    %291 = vmatmul.f32.gmra.mxu0 %v88
    %v292 = vpop.f32.mrf.mxu0
    %v293 = vadd.f32 %v69, %v292
    %294 = vmatmul.f32.gmra.mxu0 %v91
    %v295 = vpop.f32.mrf.mxu0
    %v296 = vadd.f32 %v69, %v295
    %297 = vmatmul.f32.gmra.mxu0 %v94
    %v298 = vpop.f32.mrf.mxu0
    %v299 = vadd.f32 %v69, %v298
    %300 = vmatmul.f32.gmra.mxu0 %v97
    %v301 = vpop.f32.mrf.mxu0
    %v302 = vadd.f32 %v69, %v301
    %303 = vmatmul.f32.gmra.mxu0 %v100
    %v304 = vpop.f32.mrf.mxu0
    %v305 = vadd.f32 %v69, %v304
    %306 = vdwg.mxu0
    %307 = vmatpush.msra.mxu0 0.0
    %308 = vmatpush.msra.mxu0 0.0
    %309 = vmatpush.msra.mxu0 0.0
    %310 = vmatpush.msra.mxu0 0.0
    %311 = vmatpush.msra.mxu0 0.0
    %312 = vmatpush.msra.mxu0 0.0
    %313 = vmatpush.msra.mxu0 0.0
    %314 = vmatpush.msra.mxu0 0.0
    %315 = vmatpush.msra.mxu0 0.0
    %316 = vmatpush.msra.mxu0 0.0
    %317 = vmatpush.msra.mxu0 0.0
    %318 = vmatpush.msra.mxu0 0.0
    %319 = vmatpush.msra.mxu0 %v62
    %320 = vmatpush.msra.mxu0 %v56
    %321 = vmatpush.msra.mxu0 %v50
    %322 = vmatpush.msra.mxu0 %v44
    %323 = vmatmul.f32.gmra.mxu0 %v79
    %v324 = vpop.f32.mrf.mxu0
    %v325 = vadd.f32 %v70, %v324
    %326 = vmatmul.f32.gmra.mxu0 %v82
    %v327 = vpop.f32.mrf.mxu0
    %v328 = vadd.f32 %v70, %v327
    %329 = vmatmul.f32.gmra.mxu0 %v85
    %v330 = vpop.f32.mrf.mxu0
    %v331 = vadd.f32 %v70, %v330
    %332 = vmatmul.f32.gmra.mxu0 %v88
    %v333 = vpop.f32.mrf.mxu0
    %v334 = vadd.f32 %v70, %v333
    %335 = vmatmul.f32.gmra.mxu0 %v91
    %v336 = vpop.f32.mrf.mxu0
    %v337 = vadd.f32 %v70, %v336
    %338 = vmatmul.f32.gmra.mxu0 %v94
    %v339 = vpop.f32.mrf.mxu0
    %v340 = vadd.f32 %v70, %v339
    %341 = vmatmul.f32.gmra.mxu0 %v97
    %v342 = vpop.f32.mrf.mxu0
    %v343 = vadd.f32 %v70, %v342
    %344 = vmatmul.f32.gmra.mxu0 %v100
    %v345 = vpop.f32.mrf.mxu0
    %v346 = vadd.f32 %v70, %v345
    %347 = vdwg.mxu0
    %348 = vst [vmem:[#allocation5] sm:$0xff] %v120
    %349 = vst [vmem:[#allocation5 + $0x8] sm:$0xff] %v161
    %350 = vst [vmem:[#allocation5 + $0x10] sm:$0xff] %v202
    %351 = vst [vmem:[#allocation5 + $0x18] sm:$0xff] %v243
    %352 = vst [vmem:[#allocation5 + $0x20] sm:$0xff] %v284
    %353 = vst [vmem:[#allocation5 + $0x28] sm:$0xff] %v325
    %354 = vst [vmem:[#allocation5 + $0x30] sm:$0xff] %v123
    %355 = vst [vmem:[#allocation5 + $0x38] sm:$0xff] %v164
    %356 = vst [vmem:[#allocation5 + $0x40] sm:$0xff] %v205
    %357 = vst [vmem:[#allocation5 + $0x48] sm:$0xff] %v246
    %358 = vst [vmem:[#allocation5 + $0x50] sm:$0xff] %v287
    %359 = vst [vmem:[#allocation5 + $0x58] sm:$0xff] %v328
    %360 = vst [vmem:[#allocation5 + $0x60] sm:$0xff] %v126
    %361 = vst [vmem:[#allocation5 + $0x68] sm:$0xff] %v167
    %362 = vst [vmem:[#allocation5 + $0x70] sm:$0xff] %v208
    %363 = vst [vmem:[#allocation5 + $0x78] sm:$0xff] %v249
    %364 = vst [vmem:[#allocation5 + $0x80] sm:$0xff] %v290
    %365 = vst [vmem:[#allocation5 + $0x88] sm:$0xff] %v331
    %366 = vst [vmem:[#allocation5 + $0x90] sm:$0xff] %v129
    %367 = vst [vmem:[#allocation5 + $0x98] sm:$0xff] %v170
    %368 = vst [vmem:[#allocation5 + $0xa0] sm:$0xff] %v211
    %369 = vst [vmem:[#allocation5 + $0xa8] sm:$0xff] %v252
    %370 = vst [vmem:[#allocation5 + $0xb0] sm:$0xff] %v293
    %371 = vst [vmem:[#allocation5 + $0xb8] sm:$0xff] %v334
    %372 = vst [vmem:[#allocation5 + $0xc0] sm:$0xff] %v132
    %373 = vst [vmem:[#allocation5 + $0xc8] sm:$0xff] %v173
    %374 = vst [vmem:[#allocation5 + $0xd0] sm:$0xff] %v214
    %375 = vst [vmem:[#allocation5 + $0xd8] sm:$0xff] %v255
    %376 = vst [vmem:[#allocation5 + $0xe0] sm:$0xff] %v296
    %377 = vst [vmem:[#allocation5 + $0xe8] sm:$0xff] %v337
    %378 = vst [vmem:[#allocation5 + $0xf0] sm:$0xff] %v135
    %379 = vst [vmem:[#allocation5 + $0xf8] sm:$0xff] %v176
    %380 = vst [vmem:[#allocation5 + $0x100] sm:$0xff] %v217
    %381 = vst [vmem:[#allocation5 + $0x108] sm:$0xff] %v258
    %382 = vst [vmem:[#allocation5 + $0x110] sm:$0xff] %v299
    %383 = vst [vmem:[#allocation5 + $0x118] sm:$0xff] %v340
    %384 = vst [vmem:[#allocation5 + $0x120] sm:$0xff] %v138
    %385 = vst [vmem:[#allocation5 + $0x128] sm:$0xff] %v179
    %386 = vst [vmem:[#allocation5 + $0x130] sm:$0xff] %v220
    %387 = vst [vmem:[#allocation5 + $0x138] sm:$0xff] %v261
    %388 = vst [vmem:[#allocation5 + $0x140] sm:$0xff] %v302
    %389 = vst [vmem:[#allocation5 + $0x148] sm:$0xff] %v343
    %390 = vst [vmem:[#allocation5 + $0x150] sm:$0xff] %v141
    %391 = vst [vmem:[#allocation5 + $0x158] sm:$0xff] %v182
    %392 = vst [vmem:[#allocation5 + $0x160] sm:$0xff] %v223
    %393 = vst [vmem:[#allocation5 + $0x168] sm:$0xff] %v264
    %394 = vst [vmem:[#allocation5 + $0x170] sm:$0xff] %v305
    %395 = vst [vmem:[#allocation5 + $0x178] sm:$0xff] %v346
    // Predicated region
    $region18: #{tpu_custom_call.1} parent=1 // pred_check
      _
    $region19: #{tpu_custom_call.1} parent=1 // pred_check_branch
      %397 = sbr.rel (0) target = $region21
    $region20: #{tpu_custom_call.1} parent=1 // pred_region
      %399 = vsyncadd [#allocation4], 0
      %s400 = sshll.u32 [#allocation5], 4
      %s401 = int_to_ptr.vmem [resolvable:$true] %s400
      %s402 = sshll.u32 %s3, 4
      %s403 = int_to_ptr.hbm [resolvable:$true] %s402
      %408 = dma.vmem_to_hbm [thread:$0]  %s401, 6144, %s403, [#allocation4], 768, 768, 48
    $region21: #{tpu_custom_call.1} parent=1 // pred_fallthru
      _
    // Predicated region
    $region22: #{tpu_custom_call.1} parent=1 // pred_check
      _
    $region23: #{tpu_custom_call.1} parent=1 // pred_check_branch
      %410 = sbr.rel (0) target = $region25
    $region24: #{tpu_custom_call.1} parent=1 // pred_region
      %412 = dma.done [#allocation4], 6144
    $region25: #{tpu_custom_call.1} parent=1 // pred_fallthru
      _
    %413 = vsyncpa [#allocation3], 1
    %414 = vsyncpa [#allocation4], 1

</llo_original>
